<compile_context>
chip_gen: v6e
topology: v6e:2x2x1
jax: 0.10.0
libtpu: 0.0.40
codegen_flags: <defaults>
</compile_context>

<pallas_src>
import functools

import jax
import jax.numpy as jnp
from jax import lax
from jax.experimental import pallas as pl
from jax.experimental.pallas import tpu as pltpu

_LANE = 128
_DEFAULT_BLOCK_BYTES = 4 * 1024 * 1024      # ~4 MiB per input block
_MIN_SUBLANES = {4: 8, 2: 16, 1: 32}        # min second-to-minor tile per itemsize


def _elementwise_loss(x, loss_type):
    """Per-element generator-loss term, computed in f32 on the VPU/EUP."""
    # TODO(synk): on v6e/v7x the transcendental losses ('vanilla', 'softplus')
    # could run in bf16 on the EUP for ~2x transcendental throughput; kept in
    # f32 here for accuracy parity with the reference (and v5e has no bf16 EUP).
    if loss_type == "vanilla":
        # -log(p + eps)
        return -jnp.log(x + 1e-12)
    elif loss_type == "ls":
        # (1 - p)^2
        d = 1.0 - x
        return d * d
    elif loss_type in ("wgan", "hinge"):
        # -logits
        return -x
    elif loss_type == "softplus":
        # softplus(-x) = max(-x, 0) + log1p(exp(-|x|))   (numerically stable)
        return jnp.maximum(-x, 0.0) + jnp.log1p(jnp.exp(-jnp.abs(x)))
    else:
        raise NotImplementedError(loss_type)


def _gen_loss_kernel(x_ref, o_ref, *, loss_type, tiles_per_slice, num_tiles,
                     valid_in_last, tile_elems):
    c = pl.program_id(0)                  # slice (parallel across TensorCores)
    i = pl.program_id(1)                  # tile within this slice (reduction)
    g = c * tiles_per_slice + i           # global tile id (small -> no overflow)
    last_g = num_tiles - 1

    @pl.when(i == 0)
    def _():
        o_ref[...] = jnp.zeros_like(o_ref)

    x = x_ref[...].astype(jnp.float32)
    val = _elementwise_loss(x, loss_type)

    def _accumulate(masked):
        v = val
        if masked:
            # Tile-local indices -> small int32 even for huge inputs.
            row = lax.broadcasted_iota(jnp.int32, v.shape, 0)
            col = lax.broadcasted_iota(jnp.int32, v.shape, 1)
            local = row * _LANE + col
            # select (not multiplicative mask) so OOB NaN/Inf never propagates
            v = jnp.where(local < valid_in_last, v, 0.0)
        # Per-lane partial sums accumulate into row 0 of this slice's output
        # block; the single cross-lane reduce + divide happen in the wrapper.
        o_ref[0:1, :] += jnp.sum(v, axis=0, keepdims=True)

    # Interior tiles: no mask math at all.
    @pl.when(g < last_g)
    def _():
        _accumulate(masked=False)

    # The single global-last tile masks the (lane-pad + partial-block) tail.
    # The mask is compiled out entirely when the last tile is fully valid.
    @pl.when(g == last_g)
    def _():
        _accumulate(masked=(valid_in_last < tile_elems))

    # g > last_g: duplicate tile from the rectangular (slice, tile) grid
    # (index_map clamps it to the last real tile); contributes nothing.


def generator_loss(fakes, loss="vanilla", block_bytes=_DEFAULT_BLOCK_BYTES):
    """Pallas equivalent of GeneratorLoss(loss=...)(fakes) -> scalar mean loss."""
    flat = fakes.reshape(-1)              # bitcast; native dtype (cast in-kernel)
    n_valid = flat.shape[0]
    itemsize = jnp.dtype(flat.dtype).itemsize

    # Pad only up to the next lane multiple (<= 127 elements) so the lane-dense
    # 2-D view is exact; skipped entirely when already divisible.
    # TODO(synk): for N % 128 != 0 this jnp.pad still copies the whole tensor;
    # a fully zero-copy path needs a rank-1-block kernel with the ragged tail
    # masked in-kernel, omitted here for lowering robustness.
    lane_pad = (-n_valid) % _LANE
    if lane_pad:
        flat = jnp.pad(flat, (0, lane_pad))
    rows = flat.shape[0] // _LANE
    x2d = flat.reshape(rows, _LANE)

    # Biggest legal dtype-aware tile: ~block_bytes per block with the row count
    # a multiple of the dtype's min sublane tile, or the full row extent
    # (always a legal block shape) for small inputs.
    min_sub = _MIN_SUBLANES.get(itemsize, 8)
    max_rows = max(min_sub,
                   (block_bytes // (_LANE * itemsize)) // min_sub * min_sub)
    tile_rows = rows if rows <= max_rows else max_rows
    tile_elems = tile_rows * _LANE

    num_tiles = pl.cdiv(rows, tile_rows)
    valid_in_last = n_valid - (num_tiles - 1) * tile_elems

    # Leading "parallel" axis: two slices so v7x / megacore parts split the
    # reduction across their two TensorCores; single-TC chips run them
    # sequentially at negligible cost.
    num_slices = 2 if num_tiles >= 2 else 1
    tiles_per_slice = pl.cdiv(num_tiles, num_slices)

    kernel = functools.partial(
        _gen_loss_kernel,
        loss_type=loss,
        tiles_per_slice=tiles_per_slice,
        num_tiles=num_tiles,
        valid_in_last=valid_in_last,
        tile_elems=tile_elems,
    )

    def x_index_map(c, i):
        g = c * tiles_per_slice + i
        return (jnp.minimum(g, num_tiles - 1), 0)   # clamp duplicate tail tile

    out = pl.pallas_call(
        kernel,
        out_shape=jax.ShapeDtypeStruct((num_slices * 8, _LANE), jnp.float32),
        grid_spec=pltpu.PrefetchScalarGridSpec(
            num_scalar_prefetch=0,
            grid=(num_slices, tiles_per_slice),
            in_specs=[pl.BlockSpec((tile_rows, _LANE), x_index_map)],
            out_specs=pl.BlockSpec((8, _LANE), lambda c, i: (c, 0)),
        ),
        compiler_params=pltpu.CompilerParams(
            dimension_semantics=("parallel", "arbitrary"),
        ),
    )(x2d)

    # Tiny epilogue: combine the per-slice / per-lane partials and normalize.
    return jnp.sum(out) / jnp.float32(n_valid)


def _reference_loss(fakes, loss):
    x = fakes.astype(jnp.float32)
    if loss == "vanilla":
        return -jnp.log(x + 1e-12).mean()
    elif loss == "ls":
        return ((1.0 - x) ** 2).mean()
    elif loss in ("wgan", "hinge"):
        return -x.mean()
    elif loss == "softplus":
        return jax.nn.softplus(-x).mean()
    else:
        raise NotImplementedError(loss)


if __name__ == "__main__":
    key = jax.random.PRNGKey(0)
    k_logits, k_probs, k_odd, k_big = jax.random.split(key, 4)

    # Discriminator outputs on fakes: [B, C, H, W] = [2, 4, 16, 16]
    logits = jax.random.normal(k_logits, (2, 4, 16, 16), dtype=jnp.float32)
    probs = jax.nn.sigmoid(
        jax.random.normal(k_probs, (2, 4, 16, 16), dtype=jnp.float32)
    )
    # Extra validation cases:
    #  * non-lane-divisible size (exercises the ragged-tail mask),
    #  * a larger input run with small blocks to exercise the multi-tile grid,
    #    the 2-slice parallel split, a partial final block, and the clamped
    #    duplicate tile of the rectangular grid,
    #  * bf16 inputs fed in their native dtype (in-kernel cast, bigger tiles).
    logits_odd = jax.random.normal(k_odd, (3, 5, 7, 11), dtype=jnp.float32)
    logits_big = jax.random.normal(k_big, (11, 10, 40, 32), dtype=jnp.float32)
    logits_bf16 = logits.astype(jnp.bfloat16)
    logits_big_bf16 = logits_big.astype(jnp.bfloat16)

    cases = [
        ("vanilla", probs, None),
        ("ls", probs, None),
        ("wgan", logits, None),
        ("hinge", logits, None),
        ("softplus", logits, None),
        ("softplus", logits_odd, None),          # ragged, non-128-multiple size
        ("ls", logits_big, 64 * 1024),           # multi-tile + parallel split
        ("softplus", logits_big, 64 * 1024),     # same, with transcendentals
        ("wgan", logits_bf16, None),             # bf16, in-kernel cast
        ("ls", logits_big_bf16, 64 * 1024),      # bf16 multi-tile path
    ]

    ok = True
    for loss_name, inp, bb in cases:
        if bb is None:
            got = generator_loss(inp, loss=loss_name)
        else:
            got = generator_loss(inp, loss=loss_name, block_bytes=bb)
        got = jax.block_until_ready(got)
        want = jax.block_until_ready(_reference_loss(inp, loss_name))
        if not jnp.allclose(got, want, rtol=1e-5, atol=1e-5):
            ok = False
            print(f"MISMATCH {loss_name} {inp.shape} {inp.dtype} bb={bb}: "
                  f"kernel={got} ref={want}")

    if ok:
        print("KERNEL_OK")
</pallas_src>

<mosaic_0001>
module attributes {stable_mosaic.version = 11 : i64} {
  func.func @_gen_loss_kernel(%arg0: i32, %arg1: i32, %arg2: memref<16x128xf32, #tpu.memory_space<vmem>>, %arg3: memref<8x128xf32, #tpu.memory_space<vmem>>) attributes {dimension_semantics = [#tpu.dimension_semantics<parallel>, #tpu.dimension_semantics<arbitrary>], iteration_bounds = array<i64: 1, 1>, scalar_prefetch = 0 : i64, scratch_operands = 0 : i64, tpu.core_type = #tpu.core_type<tc>, window_params = [{transform_indices = @transform_0, window_bounds = array<i64: 16, 128>}, {transform_indices = @transform_1, window_bounds = array<i64: 8, 128>}]} {
    %c1_i32 = arith.constant 1 : i32
    %0 = arith.muli %arg0, %c1_i32 : i32
    %1 = arith.addi %0, %arg1 : i32
    %c0_i32 = arith.constant 0 : i32
    %2 = arith.cmpi eq, %arg1, %c0_i32 : i32
    %3 = arith.extui %2 : i1 to i32
    %c0_i32_0 = arith.constant 0 : i32
    %4 = arith.cmpi ne, %3, %c0_i32_0 : i32
    scf.if %4 {
      %cst_7 = arith.constant 0.000000e+00 : f32
      %17 = vector.broadcast %cst_7 : f32 to vector<8x128xf32>
      %c0_8 = arith.constant 0 : index
      %c0_9 = arith.constant 0 : index
      %18 = vector.load %arg3[%c0_8, %c0_9] : memref<8x128xf32, #tpu.memory_space<vmem>>, vector<8x128xf32>
      tpu.vector_store %arg3[%c0_8, %c0_9], %17 {strides = array<i32>} : memref<8x128xf32, #tpu.memory_space<vmem>>, vector<8x128xf32>,
    } else {
    }
    %c0 = arith.constant 0 : index
    %c0_1 = arith.constant 0 : index
    %5 = vector.load %arg2[%c0, %c0_1] : memref<16x128xf32, #tpu.memory_space<vmem>>, vector<16x128xf32>
    %cst = arith.constant 9.99999996E-13 : f32
    %6 = vector.broadcast %cst : f32 to vector<16x128xf32>
    %7 = arith.addf %5, %6 : vector<16x128xf32>
    %8 = math.log %7 : vector<16x128xf32>
    %cst_2 = arith.constant 0.000000e+00 : f32
    %9 = vector.broadcast %cst_2 : f32 to vector<16x128xf32>
    %10 = arith.subf %9, %8 : vector<16x128xf32>
    %c0_i32_3 = arith.constant 0 : i32
    %11 = arith.cmpi slt, %1, %c0_i32_3 : i32
    %12 = arith.extui %11 : i1 to i32
    %c0_i32_4 = arith.constant 0 : i32
    %13 = arith.cmpi ne, %12, %c0_i32_4 : i32
    scf.if %13 {
      %c0_7 = arith.constant 0 : index
      %c0_8 = arith.constant 0 : index
      %17 = vector.load %arg3[%c0_7, %c0_8] : memref<8x128xf32, #tpu.memory_space<vmem>>, vector<1x128xf32>
      %cst_9 = arith.constant dense<0.000000e+00> : vector<128xf32>
      %18 = vector.multi_reduction <add>, %10, %cst_9 [0] : vector<16x128xf32> to vector<128xf32>
      %19 = vector.shape_cast %18 : vector<128xf32> to vector<1x128xf32>
      %20 = arith.addf %17, %19 : vector<1x128xf32>
      %c0_10 = arith.constant 0 : index
      %c0_11 = arith.constant 0 : index
      %21 = vector.load %arg3[%c0_10, %c0_11] : memref<8x128xf32, #tpu.memory_space<vmem>>, vector<1x128xf32>
      tpu.vector_store %arg3[%c0_10, %c0_11], %20 {strides = array<i32>} : memref<8x128xf32, #tpu.memory_space<vmem>>, vector<1x128xf32>,
    } else {
    }
    %c0_i32_5 = arith.constant 0 : i32
    %14 = arith.cmpi eq, %1, %c0_i32_5 : i32
    %15 = arith.extui %14 : i1 to i32
    %c0_i32_6 = arith.constant 0 : i32
    %16 = arith.cmpi ne, %15, %c0_i32_6 : i32
    scf.if %16 {
      %c0_7 = arith.constant 0 : index
      %c0_8 = arith.constant 0 : index
      %17 = vector.load %arg3[%c0_7, %c0_8] : memref<8x128xf32, #tpu.memory_space<vmem>>, vector<1x128xf32>
      %cst_9 = arith.constant dense<0.000000e+00> : vector<128xf32>
      %18 = vector.multi_reduction <add>, %10, %cst_9 [0] : vector<16x128xf32> to vector<128xf32>
      %19 = vector.shape_cast %18 : vector<128xf32> to vector<1x128xf32>
      %20 = arith.addf %17, %19 : vector<1x128xf32>
      %c0_10 = arith.constant 0 : index
      %c0_11 = arith.constant 0 : index
      %21 = vector.load %arg3[%c0_10, %c0_11] : memref<8x128xf32, #tpu.memory_space<vmem>>, vector<1x128xf32>
      tpu.vector_store %arg3[%c0_10, %c0_11], %20 {strides = array<i32>} : memref<8x128xf32, #tpu.memory_space<vmem>>, vector<1x128xf32>,
    } else {
    }
    return
  }
  func.func @transform_0(%arg0: i32, %arg1: i32) -> (i32, i32) {
    %c1_i32 = arith.constant 1 : i32
    %0 = arith.muli %arg0, %c1_i32 : i32
    %1 = arith.addi %0, %arg1 : i32
    %c0_i32 = arith.constant 0 : i32
    %2 = arith.minsi %1, %c0_i32 : i32
    %c0_i32_0 = arith.constant 0 : i32
    %c0_i32_1 = arith.constant 0 : i32
    return %2, %c0_i32_0 : i32, i32
  }
  func.func @transform_1(%arg0: i32, %arg1: i32) -> (i32, i32) {
    %c0_i32 = arith.constant 0 : i32
    %c0_i32_0 = arith.constant 0 : i32
    return %arg0, %c0_i32 : i32, i32
  }
}

</mosaic_0001>

<llo_original>
// kernel: tpu_custom_call.1
$region0: #{tpu_custom_call.1}
  #allocation0 [shape = 'u32[]', space=smem, size = 0x4, offset = 0x4, fixed_abs, tag = 'smem constant byte address 0x4 - core index']
  #allocation1 [shape = 'u32[144,128]{1,0:T(1,128)}', space=vmem, size = 0x12000, scoped, tag = 'internal scratch']
  %s0 = inlined_call_operand.hbm [shape: f32[16,128], index: 0, kind: input, shape index: {}]
  %s1 = inlined_call_operand.hbm [shape: f32[8,128], index: 1, kind: output, shape index: {}]
  %s2 = sld [smem:[#allocation0]]
  $region30: #{tpu_custom_call.1} parent=0
    _
  %s4 = ssub.s32 1, %s2
  %s5 = scalar_select 0, %s4, %s2
  $region1: #{tpu_custom_call.1} parent=0
    #allocation2 [shape = 'u8[8192]{0}', space=vmem, size = 0x2000, scoped, tag = 'input window, operand 0, single buffered']
    #allocation3 [shape = 's32[1]{0}', space=sflag, size = 0x4, scoped, tag = 'scoped memory for tpu_custom_call.1']
    #allocation4 [shape = 's32[1]{0}', space=sflag, size = 0x4, scoped, tag = 'scoped memory for tpu_custom_call.1']
    #allocation5 [shape = 'u8[4096]{0}', space=vmem, size = 0x1000, scoped, tag = 'output window, operand 0, single buffered']
    %6 = vsyncpa [#allocation3], 0
    %7 = vsyncpa [#allocation4], 0
    // Predicated region
    $region2: #{tpu_custom_call.1} parent=1 // pred_check
      _
    $region3: #{tpu_custom_call.1} parent=1 // pred_check_branch
      %9 = sbr.rel (0) target = $region5
    $region4: #{tpu_custom_call.1} parent=1 // pred_region
      %s10 = sadd.s32 0, 0
      %p11 = scmp.lt.s32.totalorder %s10, 0
      %s12 = scalar_select %p11, %s10, 0
      %s13 = smul.u32 2, %s12
      %s15 = ssub.s32 256, 256
      %16 = vsyncadd [#allocation3], %s15
      %s17 = smul.addr %s13, 128
      %s18 = scalar_lea.hbm %s0, %s17
      %s19 = sshll.u32 [#allocation2], 4
      %s20 = int_to_ptr.vmem [resolvable:$true] %s19
      %25 = dma.hbm_to_vmem [thread:$0]  %s18, 256, %s20, [#allocation3], 128, 128, 8
    $region5: #{tpu_custom_call.1} parent=1 // pred_fallthru
      _
    // Predicated region
    $region6: #{tpu_custom_call.1} parent=1 // pred_check
      _
    $region7: #{tpu_custom_call.1} parent=1 // pred_check_branch
      %27 = sbr.rel (0) target = $region9
    $region8: #{tpu_custom_call.1} parent=1 // pred_region
      %28 = dma.done [#allocation3], 256
    $region9: #{tpu_custom_call.1} parent=1 // pred_fallthru
      _
    %s29 = sadd.s32 0, 0
    %p30 = scmp.lt.s32.totalorder %s29, 0
    %s31 = scalar_select %p30, %s29, 0
    %s32 = smul.u32 2, %s31
    %s33 = sadd.s32 0, 0
    %p34 = scmp.eq.s32.totalorder 0, 0
    // Predicated region
    $region10: #{tpu_custom_call.1} parent=1 // pred_check
      %p35 = pneg %p34
    $region11: #{tpu_custom_call.1} parent=1 // pred_check_branch
      %37 = sbr.rel (%p35) target = $region13
    $region12: #{tpu_custom_call.1} parent=1 // pred_region
      %38 = vst [vmem:[#allocation5] sm:$0xff] 0.0
    $region13: #{tpu_custom_call.1} parent=1 // pred_fallthru
      _
    %v39 = vld [vmem:[#allocation2] sm:$0xff]
    %v40 = vld [vmem:[#allocation2 + $0x8] sm:$0xff]
    %v41 = vadd.f32 %v39, 1e-12
    %v42 = vadd.f32 %v40, 1e-12
    %v43 = vlog2.pop %v41
    %v44 = vmul.f32 %v43, 0.6931472
    %v45 = vlog2.pop %v42
    %v46 = vmul.f32 %v45, 0.6931472
    %v47 = vsub.f32 0.0, %v44
    %v48 = vsub.f32 0.0, %v46
    %p49 = scmp.lt.s32.totalorder %s33, 0
    // Predicated region
    $region14: #{tpu_custom_call.1} parent=1 // pred_check
      %p50 = pneg %p49
    $region15: #{tpu_custom_call.1} parent=1 // pred_check_branch
      %52 = sbr.rel (%p50) target = $region17
    $region16: #{tpu_custom_call.1} parent=1 // pred_region
      %v53 = vld [vmem:[#allocation5] sm:$0x1]
      %v54 = vadd.f32 %v47, %v48
      %v55 = vrot.slane %v54, 4
      %v56 = vadd.f32 %v54, %v55
      %v57 = vrot.slane %v56, 2
      %v58 = vadd.f32 %v56, %v57
      %v59 = vrot.slane %v58, 1
      %v60 = vadd.f32 %v58, %v59
      %v61 = vadd.f32 %v53, %v60
      %62 = vst [vmem:[#allocation5] sm:$0x1] %v61
    $region17: #{tpu_custom_call.1} parent=1 // pred_fallthru
      _
    %p63 = scmp.eq.s32.totalorder %s33, 0
    // Predicated region
    $region18: #{tpu_custom_call.1} parent=1 // pred_check
      %p64 = pneg %p63
    $region19: #{tpu_custom_call.1} parent=1 // pred_check_branch
      %66 = sbr.rel (%p64) target = $region21
    $region20: #{tpu_custom_call.1} parent=1 // pred_region
      %v67 = vld [vmem:[#allocation5] sm:$0x1]
      %v68 = vadd.f32 %v47, %v48
      %v69 = vrot.slane %v68, 4
      %v70 = vadd.f32 %v68, %v69
      %v71 = vrot.slane %v70, 2
      %v72 = vadd.f32 %v70, %v71
      %v73 = vrot.slane %v72, 1
      %v74 = vadd.f32 %v72, %v73
      %v75 = vadd.f32 %v67, %v74
      %76 = vst [vmem:[#allocation5] sm:$0x1] %v75
    $region21: #{tpu_custom_call.1} parent=1 // pred_fallthru
      _
    // Predicated region
    $region22: #{tpu_custom_call.1} parent=1 // pred_check
      _
    $region23: #{tpu_custom_call.1} parent=1 // pred_check_branch
      %78 = sbr.rel (0) target = $region25
    $region24: #{tpu_custom_call.1} parent=1 // pred_region
      %s80 = ssub.s32 128, 128
      %81 = vsyncadd [#allocation4], %s80
      %s83 = sshll.u32 [#allocation5], 4
      %s84 = int_to_ptr.vmem [resolvable:$true] %s83
      %86 = dma.vmem_to_hbm [thread:$0]  %s84, 128, %s1, [#allocation4]
    $region25: #{tpu_custom_call.1} parent=1 // pred_fallthru
      _
    // Predicated region
    $region26: #{tpu_custom_call.1} parent=1 // pred_check
      _
    $region27: #{tpu_custom_call.1} parent=1 // pred_check_branch
      %88 = sbr.rel (0) target = $region29
    $region28: #{tpu_custom_call.1} parent=1 // pred_region
      %89 = dma.done [#allocation4], 128
    $region29: #{tpu_custom_call.1} parent=1 // pred_fallthru
      _
    %90 = vsyncpa [#allocation3], 1
    %91 = vsyncpa [#allocation4], 1

</llo_original>
